<compile_context>
chip_gen: v7x
topology: tpu7x:2x2x1
jax: 0.10.0
libtpu: 0.0.40
codegen_flags: <defaults>
</compile_context>

<pallas_src>
import functools
import re

import jax
import jax.numpy as jnp
from jax.experimental import pallas as pl
from jax.experimental.pallas import tpu as pltpu


_LANE = 128
_SUBLANE = 8
_TARGET_BLOCK_BYTES = 4 * 1024 * 1024    # ~4 MiB per block; <=5 pipelined buffers ~ 20 MiB VMEM
_VMEM_LIMIT_BYTES = 32 * 1024 * 1024     # safe on v5e / v6e / v7x
_MIN_PALLAS_BYTES = 1024 * 1024          # below this, plain XLA fusion is strictly faster


def _round_up(x: int, m: int) -> int:
    return -(-x // m) * m


def _tpu_generation() -> int:
    """Best-effort TPU generation (5, 6, 7, ...). 0 if unknown."""
    try:
        kind = jax.devices()[0].device_kind.lower()
        m = re.search(r"(\d+)", kind)
        return int(m.group(1)) if m else 0
    except Exception:
        return 0


def _sublane_multiple(dtype) -> int:
    # f32 -> 8, bf16/f16 -> 16, int8/fp8 -> 32 (native packed-tile second-minor).
    return _SUBLANE * max(1, 4 // dtype.itemsize)


# ----------------------------- Pallas kernel ------------------------------ #

def _sigmoid_kernel(x_ref, o_ref, *, temperature, compute_dtype, one_eup):
    # Elementwise sigmoid(temperature * x). Multiply on the VPU; transcendental
    # on the EUP. `one_eup=True` uses the single-transcendental tanh form
    # (only when the output dtype is sub-32-bit, so precision is unaffected).
    x = x_ref[...].astype(compute_dtype)
    z = x * jnp.asarray(temperature, compute_dtype)
    if one_eup:
        half = jnp.asarray(0.5, compute_dtype)
        one = jnp.asarray(1.0, compute_dtype)
        y = half * (jnp.tanh(half * z) + one)
    else:
        y = jax.nn.sigmoid(z)
    o_ref[...] = y.astype(o_ref.dtype)


def _choose_block_rows(rows: int, sublane_mult: int, bytes_per_row: int, nbytes: int) -> int:
    """Pick a block row count: ~4 MiB blocks, dtype-aligned, >=4 (>=8 for big
    tensors) grid steps, preferring an even step count for 2-TC load balance."""
    cap = max(sublane_mult,
              (_TARGET_BLOCK_BYTES // max(1, bytes_per_row)) // sublane_mult * sublane_mult)
    if rows <= sublane_mult:
        return rows                                     # single full-extent block
    min_steps = 8 if nbytes >= (8 << 20) else 4
    block_rows = min(cap, max(sublane_mult, _round_up(pl.cdiv(rows, min_steps), sublane_mult)))
    steps = pl.cdiv(rows, block_rows)
    if steps % 2 == 1 and steps < 64:
        alt = max(sublane_mult, _round_up(pl.cdiv(rows, steps + 1), sublane_mult))
        if alt <= cap and pl.cdiv(rows, alt) % 2 == 0:
            block_rows = alt
    return block_rows


def _make_in_spec(block_rows: int, lanes: int, deep_buffer: bool) -> pl.BlockSpec:
    index_map = lambda i: (i, 0)
    if deep_buffer:
        try:
            return pl.BlockSpec((block_rows, lanes), index_map, pipeline_mode=pl.Buffered(3))
        except TypeError:
            pass  # older JAX without pipeline_mode kwarg -> default double buffer
    return pl.BlockSpec((block_rows, lanes), index_map)


def apply_sigmoid_pallas(x: jax.Array, temperature: float = 1.0,
                         *, min_pallas_bytes: int = _MIN_PALLAS_BYTES) -> jax.Array:
    """sigmoid(temperature * x), elementwise, any float shape/dtype."""
    orig_shape = x.shape
    dtype = x.dtype
    n = x.size
    nbytes = n * dtype.itemsize
    gen = _tpu_generation()

    # Compute dtype: keep bf16 native on chips with bf16 VPU/EUP (v6e/v7x),
    # upcast sub-32-bit only on v5e and older (or when generation is unknown).
    if dtype == jnp.bfloat16 and gen >= 6:
        compute_dtype = jnp.bfloat16
    elif dtype.itemsize < 4:
        compute_dtype = jnp.float32
    else:
        compute_dtype = dtype
    # One-transcendental sigmoid only when output precision is sub-32-bit.
    one_eup = dtype.itemsize < 4

    # Small-input fast path: kernel launch overhead dominates; let XLA fuse
    # the sigmoid into the producer.
    if x.ndim == 0 or nbytes < min_pallas_bytes:
        y = jax.nn.sigmoid(x.astype(compute_dtype) * jnp.asarray(temperature, compute_dtype))
        return y.astype(dtype)

    sublane_mult = _sublane_multiple(dtype)
    tile_elems = sublane_mult * _LANE

    # Lane-dense (rows, 128) slab. Zero-copy reshape when possible; otherwise
    # pad the flattened array once to a tile-aligned size so every load/store
    # is a full-width unmasked vreg access (never narrow masked vst.msk).
    padded = n % _LANE != 0
    if padded:
        n_pad = _round_up(n, tile_elems)
        x2d = jnp.pad(x.reshape(-1), (0, n_pad - n)).reshape(n_pad // _LANE, _LANE)
    else:
        x2d = x.reshape(n // _LANE, _LANE)
    rows, lanes = x2d.shape

    bytes_per_row = lanes * dtype.itemsize
    block_rows = _choose_block_rows(rows, sublane_mult, bytes_per_row, nbytes)
    grid = (pl.cdiv(rows, block_rows),)     # ragged last block handled by Pallas

    kernel = functools.partial(_sigmoid_kernel,
                               temperature=float(temperature),
                               compute_dtype=compute_dtype,
                               one_eup=one_eup)
    out2d = pl.pallas_call(
        kernel,
        out_shape=jax.ShapeDtypeStruct((rows, lanes), dtype),
        grid_spec=pltpu.PrefetchScalarGridSpec(
            num_scalar_prefetch=0,
            grid=grid,
            in_specs=[_make_in_spec(block_rows, lanes, deep_buffer=(gen >= 7))],
            out_specs=pl.BlockSpec((block_rows, lanes), lambda i: (i, 0)),
        ),
        compiler_params=pltpu.CompilerParams(
            dimension_semantics=("parallel",),
            vmem_limit_bytes=_VMEM_LIMIT_BYTES,
        ),
    )(x2d)

    if padded:
        return out2d.reshape(-1)[:n].reshape(orig_shape)
    return out2d.reshape(orig_shape)


# --------------------------- Wrapped "model" glue -------------------------- #

def make_inner_model(in_ch: int, out_ch: int):
    """Tiny deterministic model: 1x1 conv over channels (NCHW), returns a dict."""
    key = jax.random.PRNGKey(42)
    kw, kb = jax.random.split(key)
    w = jax.random.normal(kw, (out_ch, in_ch), dtype=jnp.float32) * 0.1
    b = jax.random.normal(kb, (out_ch,), dtype=jnp.float32) * 0.01

    def model(x):  # x: NCHW
        logits = jnp.einsum("nchw,oc->nohw", x, w) + b[None, :, None, None]
        return {"logits": logits, "features": x}

    return model


class ApplySigmoidTo:
    """JAX port of pytorch_toolbelt ApplySigmoidTo; large sigmoids run in Pallas."""

    def __init__(self, model, output_key="logits", temperature=1):
        if isinstance(output_key, (str, int)):
            output_key = (output_key,)
        else:
            # de-dup, preserving order (deterministic across runs)
            output_key = tuple(dict.fromkeys(output_key))
        self.output_keys = output_key
        self.model = model
        self.temperature = temperature

    def __call__(self, *inputs, **kwargs):
        output = self.model(*inputs, **kwargs)
        if isinstance(output, dict):
            output = dict(output)
            for key in self.output_keys:
                output[key] = apply_sigmoid_pallas(output[key], self.temperature)
            return output
        output = list(output)
        for key in self.output_keys:
            output[key] = apply_sigmoid_pallas(output[key], self.temperature)
        return tuple(output)


# --------------------------------- main ------------------------------------ #

if __name__ == "__main__":
    key = jax.random.PRNGKey(0)
    k0, k1, k2, k3 = jax.random.split(key, 4)

    # 1) Small NCHW demo through the wrapped module (fast path: XLA fusion).
    N, C, H, W = 2, 4, 16, 16
    x = jax.random.normal(k0, (N, C, H, W), dtype=jnp.float32)
    inner = make_inner_model(in_ch=C, out_ch=C)
    wrapped = ApplySigmoidTo(inner, output_key="logits", temperature=2.0)
    out = wrapped(x)
    jax.block_until_ready(out["logits"])
    ref = inner(x)
    ref_logits = jax.nn.sigmoid(2.0 * ref["logits"])
    assert out["logits"].shape == (N, C, H, W) and out["logits"].dtype == jnp.float32
    assert jnp.allclose(out["logits"], ref_logits, atol=1e-6, rtol=1e-6)
    assert jnp.allclose(out["features"], x)  # untouched key passes through

    # 2) Larger f32 tensor -> Pallas path (128-lane slab, even >=4 grid steps).
    xb = jax.random.normal(k1, (512, 1024), dtype=jnp.float32)
    yb = apply_sigmoid_pallas(xb, 1.5)
    jax.block_until_ready(yb)
    assert jnp.allclose(yb, jax.nn.sigmoid(1.5 * xb), atol=1e-6, rtol=1e-6)

    # 3) Ragged, non-128-divisible shape -> single pad to lane-dense (-1,128) slab.
    xr = jax.random.normal(k2, (7, 40, 11), dtype=jnp.float32)
    yr = apply_sigmoid_pallas(xr, 0.7, min_pallas_bytes=0)  # force Pallas path
    jax.block_until_ready(yr)
    assert yr.shape == xr.shape
    assert jnp.allclose(yr, jax.nn.sigmoid(0.7 * xr), atol=1e-6, rtol=1e-6)

    # 4) bf16 input -> native bf16 compute on v6e/v7x (f32 upcast on v5e),
    #    one-transcendental sigmoid, 16-row dtype-aligned blocks.
    xh = jax.random.normal(k3, (128, 256), dtype=jnp.float32).astype(jnp.bfloat16)
    yh = apply_sigmoid_pallas(xh, 2.0, min_pallas_bytes=0)   # force Pallas path
    jax.block_until_ready(yh)
    ref_h = jax.nn.sigmoid(2.0 * xh.astype(jnp.float32))
    assert yh.dtype == jnp.bfloat16
    assert jnp.allclose(yh.astype(jnp.float32), ref_h, atol=1e-2, rtol=1e-2)

    print("KERNEL_OK")
</pallas_src>

<mosaic_0001>
module attributes {stable_mosaic.version = 11 : i64} {
  func.func @_sigmoid_kernel(%arg0: i32, %arg1: memref<1024x128xf32, #tpu.memory_space<vmem>>, %arg2: memref<1024x128xf32, #tpu.memory_space<vmem>>) attributes {dimension_semantics = [#tpu.dimension_semantics<parallel>], iteration_bounds = array<i64: 4>, scalar_prefetch = 0 : i64, scratch_operands = 0 : i64, tpu.core_type = #tpu.core_type<tc>, window_params = [{transform_indices = @transform_0, window_bounds = array<i64: 1024, 128>}, {transform_indices = @transform_1, window_bounds = array<i64: 1024, 128>}]} {
    %c0 = arith.constant 0 : index
    %c0_0 = arith.constant 0 : index
    %0 = vector.load %arg1[%c0, %c0_0] : memref<1024x128xf32, #tpu.memory_space<vmem>>, vector<1024x128xf32>
    %cst = arith.constant 1.500000e+00 : f32
    %1 = vector.broadcast %cst : f32 to vector<1024x128xf32>
    %2 = arith.mulf %0, %1 : vector<1024x128xf32>
    %3 = arith.negf %2 : vector<1024x128xf32>
    %4 = math.exp %3 : vector<1024x128xf32>
    %cst_1 = arith.constant 1.000000e+00 : f32
    %5 = vector.broadcast %cst_1 : f32 to vector<1024x128xf32>
    %6 = arith.addf %5, %4 : vector<1024x128xf32>
    %7 = arith.divf %5, %6 : vector<1024x128xf32>
    %c0_2 = arith.constant 0 : index
    %c0_3 = arith.constant 0 : index
    %8 = vector.load %arg2[%c0_2, %c0_3] : memref<1024x128xf32, #tpu.memory_space<vmem>>, vector<1024x128xf32>
    tpu.vector_store %arg2[%c0_2, %c0_3], %7 {strides = array<i32>} : memref<1024x128xf32, #tpu.memory_space<vmem>>, vector<1024x128xf32>,
    return
  }
  func.func @transform_0(%arg0: i32) -> (i32, i32) {
    %c0_i32 = arith.constant 0 : i32
    %c0_i32_0 = arith.constant 0 : i32
    return %arg0, %c0_i32 : i32, i32
  }
  func.func @transform_1(%arg0: i32) -> (i32, i32) {
    %c0_i32 = arith.constant 0 : i32
    %c0_i32_0 = arith.constant 0 : i32
    return %arg0, %c0_i32 : i32, i32
  }
}

</mosaic_0001>

<llo_original>
// kernel: tpu_custom_call.1
$region0: #{tpu_custom_call.1}
  #allocation0 [shape = 'u32[]', space=smem, size = 0x4, offset = 0x4, fixed_abs, tag = 'smem constant byte address 0x4 - core index']
  #allocation1 [shape = 'u32[144,128]{1,0:T(1,128)}', space=vmem, size = 0x12000, scoped, tag = 'internal scratch']
  %s0 = inlined_call_operand.hbm [shape: f32[4096,128], index: 0, kind: input, shape index: {}]
  %s1 = inlined_call_operand.hbm [shape: f32[4096,128], index: 1, kind: output, shape index: {}]
  %s2 = sld [smem:[#allocation0]]
  $region41: #{tpu_custom_call.1} parent=0
    _
  %s4 = ssub.s32 1, %s2
  %s5 = scalar_select 0, %s4, %s2
  $region1: #{tpu_custom_call.1} parent=0
    #allocation2 [shape = 'u8[1048576]{0}', space=vmem, size = 0x100000, scoped, tag = 'input window, operand 0']
    #allocation3 [shape = 's32[2]{0}', space=sflag, size = 0x8, scoped, tag = 'scoped memory for tpu_custom_call.1']
    #allocation4 [shape = 's32[2]{0}', space=sflag, size = 0x8, scoped, tag = 'scoped memory for tpu_custom_call.1']
    #allocation5 [shape = 'u8[1048576]{0}', space=vmem, size = 0x100000, scoped, tag = 'output window, operand 0']
    %6 = vsyncpa [#allocation3], 0
    %s7 = scalar_lea.sflag [#allocation3], 1
    %8 = vsyncpa %s7, 0
    %9 = vsyncpa [#allocation4], 0
    %s10 = scalar_lea.sflag [#allocation4], 1
    %11 = vsyncpa %s10, 0
    loop: start=0, step=1, limit=6
    $region2: #{tpu_custom_call.1} parent=1 // loop_pre_header
      _
    $region3: #{tpu_custom_call.1} parent=1 // loop_header
      %s13 = sphi 0, %s17
      %p14 = scmp.ge.s32.totalorder %s13, 6
      %s23 = sphi 0, %s25
      %s26 = sphi 0, %s23
      %s27 = sphi 0, %s26
      %s43 = sphi 0, %s27
      %s49 = sphi 0, %s51
      %s52 = sphi 0, %s49
      %s53 = sphi 0, %s52
      %s69 = sphi 0, %s53
    $region4: #{tpu_custom_call.1} parent=1 // loop_header_branch
      %16 = sbr.rel (%p14) target = $region8
    $region5: #{tpu_custom_call.1} parent=1 // loop_body
      %s18 = ssub.s32 %s13, 1
      %s19 = ssub.s32 %s13, 2
      %s20 = sadd.s32 %s13, 1
      %s21 = ssub.s32 %s13, %s20
      %p22 = scmp.eq.s32.totalorder %s21, 0
      %s24 = sadd.s32 %s23, 1
      %s25 = scalar_select %p22, %s23, %s24
      %p28 = pneg %p22
      %p29 = scmp.eq.s32.totalorder %s13, 3
      %p30 = por %p28, %p29
      %p31 = scmp.ne.s32.totalorder %s23, %s26
      %p32 = scmp.eq.s32.totalorder %s13, 0
      %p33 = por %p31, %p32
      %p34 = scmp.ne.s32.totalorder %s23, %s26
      %p35 = scmp.eq.s32.totalorder %s18, 3
      %p36 = por %p34, %p35
      %p37 = scmp.ne.s32.totalorder %s26, %s27
      %p38 = scmp.eq.s32.totalorder %s18, 0
      %p39 = por %p37, %p38
      %p40 = scmp.ne.s32.totalorder %s26, %s27
      %p41 = scmp.eq.s32.totalorder %s19, 3
      %p42 = por %p40, %p41
      %p44 = scmp.ne.s32.totalorder %s27, %s43
      %p45 = scmp.eq.s32.totalorder %s19, 0
      %p46 = por %p44, %p45
      %s47 = ssub.s32 %s13, %s20
      %p48 = scmp.eq.s32.totalorder %s47, 0
      %s50 = sadd.s32 %s49, 1
      %s51 = scalar_select %p48, %s49, %s50
      %p54 = pneg %p48
      %p55 = scmp.eq.s32.totalorder %s13, 3
      %p56 = por %p54, %p55
      %p57 = scmp.ne.s32.totalorder %s49, %s52
      %p58 = scmp.eq.s32.totalorder %s13, 0
      %p59 = por %p57, %p58
      %p60 = scmp.ne.s32.totalorder %s49, %s52
      %p61 = scmp.eq.s32.totalorder %s18, 3
      %p62 = por %p60, %p61
      %p63 = scmp.ne.s32.totalorder %s52, %s53
      %p64 = scmp.eq.s32.totalorder %s18, 0
      %p65 = por %p63, %p64
      %p66 = scmp.ne.s32.totalorder %s52, %s53
      %p67 = scmp.eq.s32.totalorder %s19, 3
      %p68 = por %p66, %p67
      %p70 = scmp.ne.s32.totalorder %s53, %s69
      %p71 = scmp.eq.s32.totalorder %s19, 0
      %p72 = por %p70, %p71
      %p73 = scmp.le.s32.totalorder 1, %s13
      %p74 = scmp.lt.s32.totalorder %s13, 5
      %p75 = pnand %p73, %p74
      %p76 = pneg %p75
      // Predicated region
      $region9: #{tpu_custom_call.1} parent=5 // pred_check
        _
      $region10: #{tpu_custom_call.1} parent=5 // pred_check_branch
        %78 = sbr.rel (%p75) target = $region12
      $region11: #{tpu_custom_call.1} parent=5 // pred_region
        %s79 = ssub.s32 %s13, 1
      $region12: #{tpu_custom_call.1} parent=5 // pred_fallthru
        _
      %p80 = scmp.lt.s32.totalorder %s13, 4
      // Predicated region
      $region13: #{tpu_custom_call.1} parent=5 // pred_check
        %p81 = pneg %p80
      $region14: #{tpu_custom_call.1} parent=5 // pred_check_branch
        %83 = sbr.rel (%p81) target = $region16
      $region15: #{tpu_custom_call.1} parent=5 // pred_region
        // Predicated region
        $region17: #{tpu_custom_call.1} parent=15 // pred_check
          %p84 = pneg %p33
        $region18: #{tpu_custom_call.1} parent=15 // pred_check_branch
          %86 = sbr.rel (%p84) target = $region20
        $region19: #{tpu_custom_call.1} parent=15 // pred_region
          %s87 = sand.u32 %s23, 1
          %s88 = scalar_lea.sflag [#allocation3], %s87
          %s89 = sand.u32 %s23, 1
          %s90 = smul.addr %s89, 1024
          %s91 = scalar_lea.vmem [#allocation2], %s90
          %s92 = smul.u32 128, %s13
          %s94 = ssub.s32 16384, 16384
          %95 = vsyncadd %s88, %s94
          %s96 = smul.addr %s92, 128
          %s97 = scalar_lea.hbm %s0, %s96
          %s98 = sshll.u32 %s91, 4
          %s99 = int_to_ptr.vmem [resolvable:$true] %s98
          %104 = dma.hbm_to_vmem [thread:$0]  %s97, 16384, %s99, %s88, 128, 128, 8
        $region20: #{tpu_custom_call.1} parent=15 // pred_fallthru
          _
      $region16: #{tpu_custom_call.1} parent=5 // pred_fallthru
        _
      %p105 = scmp.le.s32.totalorder 1, %s13
      %p106 = scmp.lt.s32.totalorder %s13, 5
      %p107 = pnand %p105, %p106
      %p108 = pneg %p107
      // Predicated region
      $region21: #{tpu_custom_call.1} parent=5 // pred_check
        _
      $region22: #{tpu_custom_call.1} parent=5 // pred_check_branch
        %110 = sbr.rel (%p107) target = $region24
      $region23: #{tpu_custom_call.1} parent=5 // pred_region
        %s111 = ssub.s32 %s13, 1
        %s112 = sand.u32 %s26, 1
        %s113 = scalar_lea.sflag [#allocation3], %s112
        %s114 = sand.u32 %s26, 1
        %s115 = smul.addr %s114, 1024
        %s116 = scalar_lea.vmem [#allocation2], %s115
        // Predicated region
        $region25: #{tpu_custom_call.1} parent=23 // pred_check
          %p117 = pneg %p39
        $region26: #{tpu_custom_call.1} parent=23 // pred_check_branch
          %119 = sbr.rel (%p117) target = $region28
        $region27: #{tpu_custom_call.1} parent=23 // pred_region
          %120 = dma.done %s113, 16384
        $region28: #{tpu_custom_call.1} parent=23 // pred_fallthru
          _
        %s121 = sand.u32 %s26, 1
        %s122 = scalar_lea.sflag [#allocation3], %s121
        %s123 = sand.u32 %s26, 1
        %s124 = smul.addr %s123, 1024
        %s125 = scalar_lea.vmem [#allocation2], %s124
        %p126 = pneg %p39
        %p127 = pneg %p36
        %p128 = pneg %p65
        %p129 = pneg %p62
        %s130 = sand.u32 %s52, 1
        %s131 = scalar_lea.sflag [#allocation4], %s130
        %s132 = sand.u32 %s52, 1
        %s133 = smul.addr %s132, 1024
        %s134 = scalar_lea.vmem [#allocation5], %s133
        %s135 = smul.u32 128, %s18
        %s136 = smul.u32 128, %s18
        %v137 = vld [vmem:[%s116] sm:$0xff]
        %v138 = vld [vmem:[%s116 + $0x8] sm:$0xff]
        %v139 = vld [vmem:[%s116 + $0x10] sm:$0xff]
        %v140 = vld [vmem:[%s116 + $0x18] sm:$0xff]
        %v141 = vld [vmem:[%s116 + $0x20] sm:$0xff]
        %v142 = vld [vmem:[%s116 + $0x28] sm:$0xff]
        %v143 = vld [vmem:[%s116 + $0x30] sm:$0xff]
        %v144 = vld [vmem:[%s116 + $0x38] sm:$0xff]
        %v145 = vld [vmem:[%s116 + $0x40] sm:$0xff]
        %v146 = vld [vmem:[%s116 + $0x48] sm:$0xff]
        %v147 = vld [vmem:[%s116 + $0x50] sm:$0xff]
        %v148 = vld [vmem:[%s116 + $0x58] sm:$0xff]
        %v149 = vld [vmem:[%s116 + $0x60] sm:$0xff]
        %v150 = vld [vmem:[%s116 + $0x68] sm:$0xff]
        %v151 = vld [vmem:[%s116 + $0x70] sm:$0xff]
        %v152 = vld [vmem:[%s116 + $0x78] sm:$0xff]
        %v153 = vld [vmem:[%s116 + $0x80] sm:$0xff]
        %v154 = vld [vmem:[%s116 + $0x88] sm:$0xff]
        %v155 = vld [vmem:[%s116 + $0x90] sm:$0xff]
        %v156 = vld [vmem:[%s116 + $0x98] sm:$0xff]
        %v157 = vld [vmem:[%s116 + $0xa0] sm:$0xff]
        %v158 = vld [vmem:[%s116 + $0xa8] sm:$0xff]
        %v159 = vld [vmem:[%s116 + $0xb0] sm:$0xff]
        %v160 = vld [vmem:[%s116 + $0xb8] sm:$0xff]
        %v161 = vld [vmem:[%s116 + $0xc0] sm:$0xff]
        %v162 = vld [vmem:[%s116 + $0xc8] sm:$0xff]
        %v163 = vld [vmem:[%s116 + $0xd0] sm:$0xff]
        %v164 = vld [vmem:[%s116 + $0xd8] sm:$0xff]
        %v165 = vld [vmem:[%s116 + $0xe0] sm:$0xff]
        %v166 = vld [vmem:[%s116 + $0xe8] sm:$0xff]
        %v167 = vld [vmem:[%s116 + $0xf0] sm:$0xff]
        %v168 = vld [vmem:[%s116 + $0xf8] sm:$0xff]
        %v169 = vld [vmem:[%s116 + $0x100] sm:$0xff]
        %v170 = vld [vmem:[%s116 + $0x108] sm:$0xff]
        %v171 = vld [vmem:[%s116 + $0x110] sm:$0xff]
        %v172 = vld [vmem:[%s116 + $0x118] sm:$0xff]
        %v173 = vld [vmem:[%s116 + $0x120] sm:$0xff]
        %v174 = vld [vmem:[%s116 + $0x128] sm:$0xff]
        %v175 = vld [vmem:[%s116 + $0x130] sm:$0xff]
        %v176 = vld [vmem:[%s116 + $0x138] sm:$0xff]
        %v177 = vld [vmem:[%s116 + $0x140] sm:$0xff]
        %v178 = vld [vmem:[%s116 + $0x148] sm:$0xff]
        %v179 = vld [vmem:[%s116 + $0x150] sm:$0xff]
        %v180 = vld [vmem:[%s116 + $0x158] sm:$0xff]
        %v181 = vld [vmem:[%s116 + $0x160] sm:$0xff]
        %v182 = vld [vmem:[%s116 + $0x168] sm:$0xff]
        %v183 = vld [vmem:[%s116 + $0x170] sm:$0xff]
        %v184 = vld [vmem:[%s116 + $0x178] sm:$0xff]
        %v185 = vld [vmem:[%s116 + $0x180] sm:$0xff]
        %v186 = vld [vmem:[%s116 + $0x188] sm:$0xff]
        %v187 = vld [vmem:[%s116 + $0x190] sm:$0xff]
        %v188 = vld [vmem:[%s116 + $0x198] sm:$0xff]
        %v189 = vld [vmem:[%s116 + $0x1a0] sm:$0xff]
        %v190 = vld [vmem:[%s116 + $0x1a8] sm:$0xff]
        %v191 = vld [vmem:[%s116 + $0x1b0] sm:$0xff]
        %v192 = vld [vmem:[%s116 + $0x1b8] sm:$0xff]
        %v193 = vld [vmem:[%s116 + $0x1c0] sm:$0xff]
        %v194 = vld [vmem:[%s116 + $0x1c8] sm:$0xff]
        %v195 = vld [vmem:[%s116 + $0x1d0] sm:$0xff]
        %v196 = vld [vmem:[%s116 + $0x1d8] sm:$0xff]
        %v197 = vld [vmem:[%s116 + $0x1e0] sm:$0xff]
        %v198 = vld [vmem:[%s116 + $0x1e8] sm:$0xff]
        %v199 = vld [vmem:[%s116 + $0x1f0] sm:$0xff]
        %v200 = vld [vmem:[%s116 + $0x1f8] sm:$0xff]
        %v201 = vld [vmem:[%s116 + $0x200] sm:$0xff]
        %v202 = vld [vmem:[%s116 + $0x208] sm:$0xff]
        %v203 = vld [vmem:[%s116 + $0x210] sm:$0xff]
        %v204 = vld [vmem:[%s116 + $0x218] sm:$0xff]
        %v205 = vld [vmem:[%s116 + $0x220] sm:$0xff]
        %v206 = vld [vmem:[%s116 + $0x228] sm:$0xff]
        %v207 = vld [vmem:[%s116 + $0x230] sm:$0xff]
        %v208 = vld [vmem:[%s116 + $0x238] sm:$0xff]
        %v209 = vld [vmem:[%s116 + $0x240] sm:$0xff]
        %v210 = vld [vmem:[%s116 + $0x248] sm:$0xff]
        %v211 = vld [vmem:[%s116 + $0x250] sm:$0xff]
        %v212 = vld [vmem:[%s116 + $0x258] sm:$0xff]
        %v213 = vld [vmem:[%s116 + $0x260] sm:$0xff]
        %v214 = vld [vmem:[%s116 + $0x268] sm:$0xff]
        %v215 = vld [vmem:[%s116 + $0x270] sm:$0xff]
        %v216 = vld [vmem:[%s116 + $0x278] sm:$0xff]
        %v217 = vld [vmem:[%s116 + $0x280] sm:$0xff]
        %v218 = vld [vmem:[%s116 + $0x288] sm:$0xff]
        %v219 = vld [vmem:[%s116 + $0x290] sm:$0xff]
        %v220 = vld [vmem:[%s116 + $0x298] sm:$0xff]
        %v221 = vld [vmem:[%s116 + $0x2a0] sm:$0xff]
        %v222 = vld [vmem:[%s116 + $0x2a8] sm:$0xff]
        %v223 = vld [vmem:[%s116 + $0x2b0] sm:$0xff]
        %v224 = vld [vmem:[%s116 + $0x2b8] sm:$0xff]
        %v225 = vld [vmem:[%s116 + $0x2c0] sm:$0xff]
        %v226 = vld [vmem:[%s116 + $0x2c8] sm:$0xff]
        %v227 = vld [vmem:[%s116 + $0x2d0] sm:$0xff]
        %v228 = vld [vmem:[%s116 + $0x2d8] sm:$0xff]
        %v229 = vld [vmem:[%s116 + $0x2e0] sm:$0xff]
        %v230 = vld [vmem:[%s116 + $0x2e8] sm:$0xff]
        %v231 = vld [vmem:[%s116 + $0x2f0] sm:$0xff]
        %v232 = vld [vmem:[%s116 + $0x2f8] sm:$0xff]
        %v233 = vld [vmem:[%s116 + $0x300] sm:$0xff]
        %v234 = vld [vmem:[%s116 + $0x308] sm:$0xff]
        %v235 = vld [vmem:[%s116 + $0x310] sm:$0xff]
        %v236 = vld [vmem:[%s116 + $0x318] sm:$0xff]
        %v237 = vld [vmem:[%s116 + $0x320] sm:$0xff]
        %v238 = vld [vmem:[%s116 + $0x328] sm:$0xff]
        %v239 = vld [vmem:[%s116 + $0x330] sm:$0xff]
        %v240 = vld [vmem:[%s116 + $0x338] sm:$0xff]
        %v241 = vld [vmem:[%s116 + $0x340] sm:$0xff]
        %v242 = vld [vmem:[%s116 + $0x348] sm:$0xff]
        %v243 = vld [vmem:[%s116 + $0x350] sm:$0xff]
        %v244 = vld [vmem:[%s116 + $0x358] sm:$0xff]
        %v245 = vld [vmem:[%s116 + $0x360] sm:$0xff]
        %v246 = vld [vmem:[%s116 + $0x368] sm:$0xff]
        %v247 = vld [vmem:[%s116 + $0x370] sm:$0xff]
        %v248 = vld [vmem:[%s116 + $0x378] sm:$0xff]
        %v249 = vld [vmem:[%s116 + $0x380] sm:$0xff]
        %v250 = vld [vmem:[%s116 + $0x388] sm:$0xff]
        %v251 = vld [vmem:[%s116 + $0x390] sm:$0xff]
        %v252 = vld [vmem:[%s116 + $0x398] sm:$0xff]
        %v253 = vld [vmem:[%s116 + $0x3a0] sm:$0xff]
        %v254 = vld [vmem:[%s116 + $0x3a8] sm:$0xff]
        %v255 = vld [vmem:[%s116 + $0x3b0] sm:$0xff]
        %v256 = vld [vmem:[%s116 + $0x3b8] sm:$0xff]
        %v257 = vld [vmem:[%s116 + $0x3c0] sm:$0xff]
        %v258 = vld [vmem:[%s116 + $0x3c8] sm:$0xff]
        %v259 = vld [vmem:[%s116 + $0x3d0] sm:$0xff]
        %v260 = vld [vmem:[%s116 + $0x3d8] sm:$0xff]
        %v261 = vld [vmem:[%s116 + $0x3e0] sm:$0xff]
        %v262 = vld [vmem:[%s116 + $0x3e8] sm:$0xff]
        %v263 = vld [vmem:[%s116 + $0x3f0] sm:$0xff]
        %v264 = vld [vmem:[%s116 + $0x3f8] sm:$0xff]
        %v265 = vmul.f32 %v137, 1.5
        %v266 = vmul.f32 %v138, 1.5
        %v267 = vmul.f32 %v139, 1.5
        %v268 = vmul.f32 %v140, 1.5
        %v269 = vmul.f32 %v141, 1.5
        %v270 = vmul.f32 %v142, 1.5
        %v271 = vmul.f32 %v143, 1.5
        %v272 = vmul.f32 %v144, 1.5
        %v273 = vmul.f32 %v145, 1.5
        %v274 = vmul.f32 %v146, 1.5
        %v275 = vmul.f32 %v147, 1.5
        %v276 = vmul.f32 %v148, 1.5
        %v277 = vmul.f32 %v149, 1.5
        %v278 = vmul.f32 %v150, 1.5
        %v279 = vmul.f32 %v151, 1.5
        %v280 = vmul.f32 %v152, 1.5
        %v281 = vmul.f32 %v153, 1.5
        %v282 = vmul.f32 %v154, 1.5
        %v283 = vmul.f32 %v155, 1.5
        %v284 = vmul.f32 %v156, 1.5
        %v285 = vmul.f32 %v157, 1.5
        %v286 = vmul.f32 %v158, 1.5
        %v287 = vmul.f32 %v159, 1.5
        %v288 = vmul.f32 %v160, 1.5
        %v289 = vmul.f32 %v161, 1.5
        %v290 = vmul.f32 %v162, 1.5
        %v291 = vmul.f32 %v163, 1.5
        %v292 = vmul.f32 %v164, 1.5
        %v293 = vmul.f32 %v165, 1.5
        %v294 = vmul.f32 %v166, 1.5
        %v295 = vmul.f32 %v167, 1.5
        %v296 = vmul.f32 %v168, 1.5
        %v297 = vmul.f32 %v169, 1.5
        %v298 = vmul.f32 %v170, 1.5
        %v299 = vmul.f32 %v171, 1.5
        %v300 = vmul.f32 %v172, 1.5
        %v301 = vmul.f32 %v173, 1.5
        %v302 = vmul.f32 %v174, 1.5
        %v303 = vmul.f32 %v175, 1.5
        %v304 = vmul.f32 %v176, 1.5
        %v305 = vmul.f32 %v177, 1.5
        %v306 = vmul.f32 %v178, 1.5
        %v307 = vmul.f32 %v179, 1.5
        %v308 = vmul.f32 %v180, 1.5
        %v309 = vmul.f32 %v181, 1.5
        %v310 = vmul.f32 %v182, 1.5
        %v311 = vmul.f32 %v183, 1.5
        %v312 = vmul.f32 %v184, 1.5
        %v313 = vmul.f32 %v185, 1.5
        %v314 = vmul.f32 %v186, 1.5
        %v315 = vmul.f32 %v187, 1.5
        %v316 = vmul.f32 %v188, 1.5
        %v317 = vmul.f32 %v189, 1.5
        %v318 = vmul.f32 %v190, 1.5
        %v319 = vmul.f32 %v191, 1.5
        %v320 = vmul.f32 %v192, 1.5
        %v321 = vmul.f32 %v193, 1.5
        %v322 = vmul.f32 %v194, 1.5
        %v323 = vmul.f32 %v195, 1.5
        %v324 = vmul.f32 %v196, 1.5
        %v325 = vmul.f32 %v197, 1.5
        %v326 = vmul.f32 %v198, 1.5
        %v327 = vmul.f32 %v199, 1.5
        %v328 = vmul.f32 %v200, 1.5
        %v329 = vmul.f32 %v201, 1.5
        %v330 = vmul.f32 %v202, 1.5
        %v331 = vmul.f32 %v203, 1.5
        %v332 = vmul.f32 %v204, 1.5
        %v333 = vmul.f32 %v205, 1.5
        %v334 = vmul.f32 %v206, 1.5
        %v335 = vmul.f32 %v207, 1.5
        %v336 = vmul.f32 %v208, 1.5
        %v337 = vmul.f32 %v209, 1.5
        %v338 = vmul.f32 %v210, 1.5
        %v339 = vmul.f32 %v211, 1.5
        %v340 = vmul.f32 %v212, 1.5
        %v341 = vmul.f32 %v213, 1.5
        %v342 = vmul.f32 %v214, 1.5
        %v343 = vmul.f32 %v215, 1.5
        %v344 = vmul.f32 %v216, 1.5
        %v345 = vmul.f32 %v217, 1.5
        %v346 = vmul.f32 %v218, 1.5
        %v347 = vmul.f32 %v219, 1.5
        %v348 = vmul.f32 %v220, 1.5
        %v349 = vmul.f32 %v221, 1.5
        %v350 = vmul.f32 %v222, 1.5
        %v351 = vmul.f32 %v223, 1.5
        %v352 = vmul.f32 %v224, 1.5
        %v353 = vmul.f32 %v225, 1.5
        %v354 = vmul.f32 %v226, 1.5
        %v355 = vmul.f32 %v227, 1.5
        %v356 = vmul.f32 %v228, 1.5
        %v357 = vmul.f32 %v229, 1.5
        %v358 = vmul.f32 %v230, 1.5
        %v359 = vmul.f32 %v231, 1.5
        %v360 = vmul.f32 %v232, 1.5
        %v361 = vmul.f32 %v233, 1.5
        %v362 = vmul.f32 %v234, 1.5
        %v363 = vmul.f32 %v235, 1.5
        %v364 = vmul.f32 %v236, 1.5
        %v365 = vmul.f32 %v237, 1.5
        %v366 = vmul.f32 %v238, 1.5
        %v367 = vmul.f32 %v239, 1.5
        %v368 = vmul.f32 %v240, 1.5
        %v369 = vmul.f32 %v241, 1.5
        %v370 = vmul.f32 %v242, 1.5
        %v371 = vmul.f32 %v243, 1.5
        %v372 = vmul.f32 %v244, 1.5
        %v373 = vmul.f32 %v245, 1.5
        %v374 = vmul.f32 %v246, 1.5
        %v375 = vmul.f32 %v247, 1.5
        %v376 = vmul.f32 %v248, 1.5
        %v377 = vmul.f32 %v249, 1.5
        %v378 = vmul.f32 %v250, 1.5
        %v379 = vmul.f32 %v251, 1.5
        %v380 = vmul.f32 %v252, 1.5
        %v381 = vmul.f32 %v253, 1.5
        %v382 = vmul.f32 %v254, 1.5
        %v383 = vmul.f32 %v255, 1.5
        %v384 = vmul.f32 %v256, 1.5
        %v385 = vmul.f32 %v257, 1.5
        %v386 = vmul.f32 %v258, 1.5
        %v387 = vmul.f32 %v259, 1.5
        %v388 = vmul.f32 %v260, 1.5
        %v389 = vmul.f32 %v261, 1.5
        %v390 = vmul.f32 %v262, 1.5
        %v391 = vmul.f32 %v263, 1.5
        %v392 = vmul.f32 %v264, 1.5
        %v393 = vxor.u32 %v265, 2147483648
        %v394 = vxor.u32 %v266, 2147483648
        %v395 = vxor.u32 %v267, 2147483648
        %v396 = vxor.u32 %v268, 2147483648
        %v397 = vxor.u32 %v269, 2147483648
        %v398 = vxor.u32 %v270, 2147483648
        %v399 = vxor.u32 %v271, 2147483648
        %v400 = vxor.u32 %v272, 2147483648
        %v401 = vxor.u32 %v273, 2147483648
        %v402 = vxor.u32 %v274, 2147483648
        %v403 = vxor.u32 %v275, 2147483648
        %v404 = vxor.u32 %v276, 2147483648
        %v405 = vxor.u32 %v277, 2147483648
        %v406 = vxor.u32 %v278, 2147483648
        %v407 = vxor.u32 %v279, 2147483648
        %v408 = vxor.u32 %v280, 2147483648
        %v409 = vxor.u32 %v281, 2147483648
        %v410 = vxor.u32 %v282, 2147483648
        %v411 = vxor.u32 %v283, 2147483648
        %v412 = vxor.u32 %v284, 2147483648
        %v413 = vxor.u32 %v285, 2147483648
        %v414 = vxor.u32 %v286, 2147483648
        %v415 = vxor.u32 %v287, 2147483648
        %v416 = vxor.u32 %v288, 2147483648
        %v417 = vxor.u32 %v289, 2147483648
        %v418 = vxor.u32 %v290, 2147483648
        %v419 = vxor.u32 %v291, 2147483648
        %v420 = vxor.u32 %v292, 2147483648
        %v421 = vxor.u32 %v293, 2147483648
        %v422 = vxor.u32 %v294, 2147483648
        %v423 = vxor.u32 %v295, 2147483648
        %v424 = vxor.u32 %v296, 2147483648
        %v425 = vxor.u32 %v297, 2147483648
        %v426 = vxor.u32 %v298, 2147483648
        %v427 = vxor.u32 %v299, 2147483648
        %v428 = vxor.u32 %v300, 2147483648
        %v429 = vxor.u32 %v301, 2147483648
        %v430 = vxor.u32 %v302, 2147483648
        %v431 = vxor.u32 %v303, 2147483648
        %v432 = vxor.u32 %v304, 2147483648
        %v433 = vxor.u32 %v305, 2147483648
        %v434 = vxor.u32 %v306, 2147483648
        %v435 = vxor.u32 %v307, 2147483648
        %v436 = vxor.u32 %v308, 2147483648
        %v437 = vxor.u32 %v309, 2147483648
        %v438 = vxor.u32 %v310, 2147483648
        %v439 = vxor.u32 %v311, 2147483648
        %v440 = vxor.u32 %v312, 2147483648
        %v441 = vxor.u32 %v313, 2147483648
        %v442 = vxor.u32 %v314, 2147483648
        %v443 = vxor.u32 %v315, 2147483648
        %v444 = vxor.u32 %v316, 2147483648
        %v445 = vxor.u32 %v317, 2147483648
        %v446 = vxor.u32 %v318, 2147483648
        %v447 = vxor.u32 %v319, 2147483648
        %v448 = vxor.u32 %v320, 2147483648
        %v449 = vxor.u32 %v321, 2147483648
        %v450 = vxor.u32 %v322, 2147483648
        %v451 = vxor.u32 %v323, 2147483648
        %v452 = vxor.u32 %v324, 2147483648
        %v453 = vxor.u32 %v325, 2147483648
        %v454 = vxor.u32 %v326, 2147483648
        %v455 = vxor.u32 %v327, 2147483648
        %v456 = vxor.u32 %v328, 2147483648
        %v457 = vxor.u32 %v329, 2147483648
        %v458 = vxor.u32 %v330, 2147483648
        %v459 = vxor.u32 %v331, 2147483648
        %v460 = vxor.u32 %v332, 2147483648
        %v461 = vxor.u32 %v333, 2147483648
        %v462 = vxor.u32 %v334, 2147483648
        %v463 = vxor.u32 %v335, 2147483648
        %v464 = vxor.u32 %v336, 2147483648
        %v465 = vxor.u32 %v337, 2147483648
        %v466 = vxor.u32 %v338, 2147483648
        %v467 = vxor.u32 %v339, 2147483648
        %v468 = vxor.u32 %v340, 2147483648
        %v469 = vxor.u32 %v341, 2147483648
        %v470 = vxor.u32 %v342, 2147483648
        %v471 = vxor.u32 %v343, 2147483648
        %v472 = vxor.u32 %v344, 2147483648
        %v473 = vxor.u32 %v345, 2147483648
        %v474 = vxor.u32 %v346, 2147483648
        %v475 = vxor.u32 %v347, 2147483648
        %v476 = vxor.u32 %v348, 2147483648
        %v477 = vxor.u32 %v349, 2147483648
        %v478 = vxor.u32 %v350, 2147483648
        %v479 = vxor.u32 %v351, 2147483648
        %v480 = vxor.u32 %v352, 2147483648
        %v481 = vxor.u32 %v353, 2147483648
        %v482 = vxor.u32 %v354, 2147483648
        %v483 = vxor.u32 %v355, 2147483648
        %v484 = vxor.u32 %v356, 2147483648
        %v485 = vxor.u32 %v357, 2147483648
        %v486 = vxor.u32 %v358, 2147483648
        %v487 = vxor.u32 %v359, 2147483648
        %v488 = vxor.u32 %v360, 2147483648
        %v489 = vxor.u32 %v361, 2147483648
        %v490 = vxor.u32 %v362, 2147483648
        %v491 = vxor.u32 %v363, 2147483648
        %v492 = vxor.u32 %v364, 2147483648
        %v493 = vxor.u32 %v365, 2147483648
        %v494 = vxor.u32 %v366, 2147483648
        %v495 = vxor.u32 %v367, 2147483648
        %v496 = vxor.u32 %v368, 2147483648
        %v497 = vxor.u32 %v369, 2147483648
        %v498 = vxor.u32 %v370, 2147483648
        %v499 = vxor.u32 %v371, 2147483648
        %v500 = vxor.u32 %v372, 2147483648
        %v501 = vxor.u32 %v373, 2147483648
        %v502 = vxor.u32 %v374, 2147483648
        %v503 = vxor.u32 %v375, 2147483648
        %v504 = vxor.u32 %v376, 2147483648
        %v505 = vxor.u32 %v377, 2147483648
        %v506 = vxor.u32 %v378, 2147483648
        %v507 = vxor.u32 %v379, 2147483648
        %v508 = vxor.u32 %v380, 2147483648
        %v509 = vxor.u32 %v381, 2147483648
        %v510 = vxor.u32 %v382, 2147483648
        %v511 = vxor.u32 %v383, 2147483648
        %v512 = vxor.u32 %v384, 2147483648
        %v513 = vxor.u32 %v385, 2147483648
        %v514 = vxor.u32 %v386, 2147483648
        %v515 = vxor.u32 %v387, 2147483648
        %v516 = vxor.u32 %v388, 2147483648
        %v517 = vxor.u32 %v389, 2147483648
        %v518 = vxor.u32 %v390, 2147483648
        %v519 = vxor.u32 %v391, 2147483648
        %v520 = vxor.u32 %v392, 2147483648
        %v521 = vmul.f32 %v393, 1.442695
        %v522 = vpow.pop %v521
        %v523 = vmul.f32 %v394, 1.442695
        %v524 = vpow.pop %v523
        %v525 = vmul.f32 %v395, 1.442695
        %v526 = vpow.pop %v525
        %v527 = vmul.f32 %v396, 1.442695
        %v528 = vpow.pop %v527
        %v529 = vmul.f32 %v397, 1.442695
        %v530 = vpow.pop %v529
        %v531 = vmul.f32 %v398, 1.442695
        %v532 = vpow.pop %v531
        %v533 = vmul.f32 %v399, 1.442695
        %v534 = vpow.pop %v533
        %v535 = vmul.f32 %v400, 1.442695
        %v536 = vpow.pop %v535
        %v537 = vmul.f32 %v401, 1.442695
        %v538 = vpow.pop %v537
        %v539 = vmul.f32 %v402, 1.442695
        %v540 = vpow.pop %v539
        %v541 = vmul.f32 %v403, 1.442695
        %v542 = vpow.pop %v541
        %v543 = vmul.f32 %v404, 1.442695
        %v544 = vpow.pop %v543
        %v545 = vmul.f32 %v405, 1.442695
        %v546 = vpow.pop %v545
        %v547 = vmul.f32 %v406, 1.442695
        %v548 = vpow.pop %v547
        %v549 = vmul.f32 %v407, 1.442695
        %v550 = vpow.pop %v549
        %v551 = vmul.f32 %v408, 1.442695
        %v552 = vpow.pop %v551
        %v553 = vmul.f32 %v409, 1.442695
        %v554 = vpow.pop %v553
        %v555 = vmul.f32 %v410, 1.442695
        %v556 = vpow.pop %v555
        %v557 = vmul.f32 %v411, 1.442695
        %v558 = vpow.pop %v557
        %v559 = vmul.f32 %v412, 1.442695
        %v560 = vpow.pop %v559
        %v561 = vmul.f32 %v413, 1.442695
        %v562 = vpow.pop %v561
        %v563 = vmul.f32 %v414, 1.442695
        %v564 = vpow.pop %v563
        %v565 = vmul.f32 %v415, 1.442695
        %v566 = vpow.pop %v565
        %v567 = vmul.f32 %v416, 1.442695
        %v568 = vpow.pop %v567
        %v569 = vmul.f32 %v417, 1.442695
        %v570 = vpow.pop %v569
        %v571 = vmul.f32 %v418, 1.442695
        %v572 = vpow.pop %v571
        %v573 = vmul.f32 %v419, 1.442695
        %v574 = vpow.pop %v573
        %v575 = vmul.f32 %v420, 1.442695
        %v576 = vpow.pop %v575
        %v577 = vmul.f32 %v421, 1.442695
        %v578 = vpow.pop %v577
        %v579 = vmul.f32 %v422, 1.442695
        %v580 = vpow.pop %v579
        %v581 = vmul.f32 %v423, 1.442695
        %v582 = vpow.pop %v581
        %v583 = vmul.f32 %v424, 1.442695
        %v584 = vpow.pop %v583
        %v585 = vmul.f32 %v425, 1.442695
        %v586 = vpow.pop %v585
        %v587 = vmul.f32 %v426, 1.442695
        %v588 = vpow.pop %v587
        %v589 = vmul.f32 %v427, 1.442695
        %v590 = vpow.pop %v589
        %v591 = vmul.f32 %v428, 1.442695
        %v592 = vpow.pop %v591
        %v593 = vmul.f32 %v429, 1.442695
        %v594 = vpow.pop %v593
        %v595 = vmul.f32 %v430, 1.442695
        %v596 = vpow.pop %v595
        %v597 = vmul.f32 %v431, 1.442695
        %v598 = vpow.pop %v597
        %v599 = vmul.f32 %v432, 1.442695
        %v600 = vpow.pop %v599
        %v601 = vmul.f32 %v433, 1.442695
        %v602 = vpow.pop %v601
        %v603 = vmul.f32 %v434, 1.442695
        %v604 = vpow.pop %v603
        %v605 = vmul.f32 %v435, 1.442695
        %v606 = vpow.pop %v605
        %v607 = vmul.f32 %v436, 1.442695
        %v608 = vpow.pop %v607
        %v609 = vmul.f32 %v437, 1.442695
        %v610 = vpow.pop %v609
        %v611 = vmul.f32 %v438, 1.442695
        %v612 = vpow.pop %v611
        %v613 = vmul.f32 %v439, 1.442695
        %v614 = vpow.pop %v613
        %v615 = vmul.f32 %v440, 1.442695
        %v616 = vpow.pop %v615
        %v617 = vmul.f32 %v441, 1.442695
        %v618 = vpow.pop %v617
        %v619 = vmul.f32 %v442, 1.442695
        %v620 = vpow.pop %v619
        %v621 = vmul.f32 %v443, 1.442695
        %v622 = vpow.pop %v621
        %v623 = vmul.f32 %v444, 1.442695
        %v624 = vpow.pop %v623
        %v625 = vmul.f32 %v445, 1.442695
        %v626 = vpow.pop %v625
        %v627 = vmul.f32 %v446, 1.442695
        %v628 = vpow.pop %v627
        %v629 = vmul.f32 %v447, 1.442695
        %v630 = vpow.pop %v629
        %v631 = vmul.f32 %v448, 1.442695
        %v632 = vpow.pop %v631
        %v633 = vmul.f32 %v449, 1.442695
        %v634 = vpow.pop %v633
        %v635 = vmul.f32 %v450, 1.442695
        %v636 = vpow.pop %v635
        %v637 = vmul.f32 %v451, 1.442695
        %v638 = vpow.pop %v637
        %v639 = vmul.f32 %v452, 1.442695
        %v640 = vpow.pop %v639
        %v641 = vmul.f32 %v453, 1.442695
        %v642 = vpow.pop %v641
        %v643 = vmul.f32 %v454, 1.442695
        %v644 = vpow.pop %v643
        %v645 = vmul.f32 %v455, 1.442695
        %v646 = vpow.pop %v645
        %v647 = vmul.f32 %v456, 1.442695
        %v648 = vpow.pop %v647
        %v649 = vmul.f32 %v457, 1.442695
        %v650 = vpow.pop %v649
        %v651 = vmul.f32 %v458, 1.442695
        %v652 = vpow.pop %v651
        %v653 = vmul.f32 %v459, 1.442695
        %v654 = vpow.pop %v653
        %v655 = vmul.f32 %v460, 1.442695
        %v656 = vpow.pop %v655
        %v657 = vmul.f32 %v461, 1.442695
        %v658 = vpow.pop %v657
        %v659 = vmul.f32 %v462, 1.442695
        %v660 = vpow.pop %v659
        %v661 = vmul.f32 %v463, 1.442695
        %v662 = vpow.pop %v661
        %v663 = vmul.f32 %v464, 1.442695
        %v664 = vpow.pop %v663
        %v665 = vmul.f32 %v465, 1.442695
        %v666 = vpow.pop %v665
        %v667 = vmul.f32 %v466, 1.442695
        %v668 = vpow.pop %v667
        %v669 = vmul.f32 %v467, 1.442695
        %v670 = vpow.pop %v669
        %v671 = vmul.f32 %v468, 1.442695
        %v672 = vpow.pop %v671
        %v673 = vmul.f32 %v469, 1.442695
        %v674 = vpow.pop %v673
        %v675 = vmul.f32 %v470, 1.442695
        %v676 = vpow.pop %v675
        %v677 = vmul.f32 %v471, 1.442695
        %v678 = vpow.pop %v677
        %v679 = vmul.f32 %v472, 1.442695
        %v680 = vpow.pop %v679
        %v681 = vmul.f32 %v473, 1.442695
        %v682 = vpow.pop %v681
        %v683 = vmul.f32 %v474, 1.442695
        %v684 = vpow.pop %v683
        %v685 = vmul.f32 %v475, 1.442695
        %v686 = vpow.pop %v685
        %v687 = vmul.f32 %v476, 1.442695
        %v688 = vpow.pop %v687
        %v689 = vmul.f32 %v477, 1.442695
        %v690 = vpow.pop %v689
        %v691 = vmul.f32 %v478, 1.442695
        %v692 = vpow.pop %v691
        %v693 = vmul.f32 %v479, 1.442695
        %v694 = vpow.pop %v693
        %v695 = vmul.f32 %v480, 1.442695
        %v696 = vpow.pop %v695
        %v697 = vmul.f32 %v481, 1.442695
        %v698 = vpow.pop %v697
        %v699 = vmul.f32 %v482, 1.442695
        %v700 = vpow.pop %v699
        %v701 = vmul.f32 %v483, 1.442695
        %v702 = vpow.pop %v701
        %v703 = vmul.f32 %v484, 1.442695
        %v704 = vpow.pop %v703
        %v705 = vmul.f32 %v485, 1.442695
        %v706 = vpow.pop %v705
        %v707 = vmul.f32 %v486, 1.442695
        %v708 = vpow.pop %v707
        %v709 = vmul.f32 %v487, 1.442695
        %v710 = vpow.pop %v709
        %v711 = vmul.f32 %v488, 1.442695
        %v712 = vpow.pop %v711
        %v713 = vmul.f32 %v489, 1.442695
        %v714 = vpow.pop %v713
        %v715 = vmul.f32 %v490, 1.442695
        %v716 = vpow.pop %v715
        %v717 = vmul.f32 %v491, 1.442695
        %v718 = vpow.pop %v717
        %v719 = vmul.f32 %v492, 1.442695
        %v720 = vpow.pop %v719
        %v721 = vmul.f32 %v493, 1.442695
        %v722 = vpow.pop %v721
        %v723 = vmul.f32 %v494, 1.442695
        %v724 = vpow.pop %v723
        %v725 = vmul.f32 %v495, 1.442695
        %v726 = vpow.pop %v725
        %v727 = vmul.f32 %v496, 1.442695
        %v728 = vpow.pop %v727
        %v729 = vmul.f32 %v497, 1.442695
        %v730 = vpow.pop %v729
        %v731 = vmul.f32 %v498, 1.442695
        %v732 = vpow.pop %v731
        %v733 = vmul.f32 %v499, 1.442695
        %v734 = vpow.pop %v733
        %v735 = vmul.f32 %v500, 1.442695
        %v736 = vpow.pop %v735
        %v737 = vmul.f32 %v501, 1.442695
        %v738 = vpow.pop %v737
        %v739 = vmul.f32 %v502, 1.442695
        %v740 = vpow.pop %v739
        %v741 = vmul.f32 %v503, 1.442695
        %v742 = vpow.pop %v741
        %v743 = vmul.f32 %v504, 1.442695
        %v744 = vpow.pop %v743
        %v745 = vmul.f32 %v505, 1.442695
        %v746 = vpow.pop %v745
        %v747 = vmul.f32 %v506, 1.442695
        %v748 = vpow.pop %v747
        %v749 = vmul.f32 %v507, 1.442695
        %v750 = vpow.pop %v749
        %v751 = vmul.f32 %v508, 1.442695
        %v752 = vpow.pop %v751
        %v753 = vmul.f32 %v509, 1.442695
        %v754 = vpow.pop %v753
        %v755 = vmul.f32 %v510, 1.442695
        %v756 = vpow.pop %v755
        %v757 = vmul.f32 %v511, 1.442695
        %v758 = vpow.pop %v757
        %v759 = vmul.f32 %v512, 1.442695
        %v760 = vpow.pop %v759
        %v761 = vmul.f32 %v513, 1.442695
        %v762 = vpow.pop %v761
        %v763 = vmul.f32 %v514, 1.442695
        %v764 = vpow.pop %v763
        %v765 = vmul.f32 %v515, 1.442695
        %v766 = vpow.pop %v765
        %v767 = vmul.f32 %v516, 1.442695
        %v768 = vpow.pop %v767
        %v769 = vmul.f32 %v517, 1.442695
        %v770 = vpow.pop %v769
        %v771 = vmul.f32 %v518, 1.442695
        %v772 = vpow.pop %v771
        %v773 = vmul.f32 %v519, 1.442695
        %v774 = vpow.pop %v773
        %v775 = vmul.f32 %v520, 1.442695
        %v776 = vpow.pop %v775
        %v777 = vadd.f32 %v522, 1.0
        %v778 = vadd.f32 %v524, 1.0
        %v779 = vadd.f32 %v526, 1.0
        %v780 = vadd.f32 %v528, 1.0
        %v781 = vadd.f32 %v530, 1.0
        %v782 = vadd.f32 %v532, 1.0
        %v783 = vadd.f32 %v534, 1.0
        %v784 = vadd.f32 %v536, 1.0
        %v785 = vadd.f32 %v538, 1.0
        %v786 = vadd.f32 %v540, 1.0
        %v787 = vadd.f32 %v542, 1.0
        %v788 = vadd.f32 %v544, 1.0
        %v789 = vadd.f32 %v546, 1.0
        %v790 = vadd.f32 %v548, 1.0
        %v791 = vadd.f32 %v550, 1.0
        %v792 = vadd.f32 %v552, 1.0
        %v793 = vadd.f32 %v554, 1.0
        %v794 = vadd.f32 %v556, 1.0
        %v795 = vadd.f32 %v558, 1.0
        %v796 = vadd.f32 %v560, 1.0
        %v797 = vadd.f32 %v562, 1.0
        %v798 = vadd.f32 %v564, 1.0
        %v799 = vadd.f32 %v566, 1.0
        %v800 = vadd.f32 %v568, 1.0
        %v801 = vadd.f32 %v570, 1.0
        %v802 = vadd.f32 %v572, 1.0
        %v803 = vadd.f32 %v574, 1.0
        %v804 = vadd.f32 %v576, 1.0
        %v805 = vadd.f32 %v578, 1.0
        %v806 = vadd.f32 %v580, 1.0
        %v807 = vadd.f32 %v582, 1.0
        %v808 = vadd.f32 %v584, 1.0
        %v809 = vadd.f32 %v586, 1.0
        %v810 = vadd.f32 %v588, 1.0
        %v811 = vadd.f32 %v590, 1.0
        %v812 = vadd.f32 %v592, 1.0
        %v813 = vadd.f32 %v594, 1.0
        %v814 = vadd.f32 %v596, 1.0
        %v815 = vadd.f32 %v598, 1.0
        %v816 = vadd.f32 %v600, 1.0
        %v817 = vadd.f32 %v602, 1.0
        %v818 = vadd.f32 %v604, 1.0
        %v819 = vadd.f32 %v606, 1.0
        %v820 = vadd.f32 %v608, 1.0
        %v821 = vadd.f32 %v610, 1.0
        %v822 = vadd.f32 %v612, 1.0
        %v823 = vadd.f32 %v614, 1.0
        %v824 = vadd.f32 %v616, 1.0
        %v825 = vadd.f32 %v618, 1.0
        %v826 = vadd.f32 %v620, 1.0
        %v827 = vadd.f32 %v622, 1.0
        %v828 = vadd.f32 %v624, 1.0
        %v829 = vadd.f32 %v626, 1.0
        %v830 = vadd.f32 %v628, 1.0
        %v831 = vadd.f32 %v630, 1.0
        %v832 = vadd.f32 %v632, 1.0
        %v833 = vadd.f32 %v634, 1.0
        %v834 = vadd.f32 %v636, 1.0
        %v835 = vadd.f32 %v638, 1.0
        %v836 = vadd.f32 %v640, 1.0
        %v837 = vadd.f32 %v642, 1.0
        %v838 = vadd.f32 %v644, 1.0
        %v839 = vadd.f32 %v646, 1.0
        %v840 = vadd.f32 %v648, 1.0
        %v841 = vadd.f32 %v650, 1.0
        %v842 = vadd.f32 %v652, 1.0
        %v843 = vadd.f32 %v654, 1.0
        %v844 = vadd.f32 %v656, 1.0
        %v845 = vadd.f32 %v658, 1.0
        %v846 = vadd.f32 %v660, 1.0
        %v847 = vadd.f32 %v662, 1.0
        %v848 = vadd.f32 %v664, 1.0
        %v849 = vadd.f32 %v666, 1.0
        %v850 = vadd.f32 %v668, 1.0
        %v851 = vadd.f32 %v670, 1.0
        %v852 = vadd.f32 %v672, 1.0
        %v853 = vadd.f32 %v674, 1.0
        %v854 = vadd.f32 %v676, 1.0
        %v855 = vadd.f32 %v678, 1.0
        %v856 = vadd.f32 %v680, 1.0
        %v857 = vadd.f32 %v682, 1.0
        %v858 = vadd.f32 %v684, 1.0
        %v859 = vadd.f32 %v686, 1.0
        %v860 = vadd.f32 %v688, 1.0
        %v861 = vadd.f32 %v690, 1.0
        %v862 = vadd.f32 %v692, 1.0
        %v863 = vadd.f32 %v694, 1.0
        %v864 = vadd.f32 %v696, 1.0
        %v865 = vadd.f32 %v698, 1.0
        %v866 = vadd.f32 %v700, 1.0
        %v867 = vadd.f32 %v702, 1.0
        %v868 = vadd.f32 %v704, 1.0
        %v869 = vadd.f32 %v706, 1.0
        %v870 = vadd.f32 %v708, 1.0
        %v871 = vadd.f32 %v710, 1.0
        %v872 = vadd.f32 %v712, 1.0
        %v873 = vadd.f32 %v714, 1.0
        %v874 = vadd.f32 %v716, 1.0
        %v875 = vadd.f32 %v718, 1.0
        %v876 = vadd.f32 %v720, 1.0
        %v877 = vadd.f32 %v722, 1.0
        %v878 = vadd.f32 %v724, 1.0
        %v879 = vadd.f32 %v726, 1.0
        %v880 = vadd.f32 %v728, 1.0
        %v881 = vadd.f32 %v730, 1.0
        %v882 = vadd.f32 %v732, 1.0
        %v883 = vadd.f32 %v734, 1.0
        %v884 = vadd.f32 %v736, 1.0
        %v885 = vadd.f32 %v738, 1.0
        %v886 = vadd.f32 %v740, 1.0
        %v887 = vadd.f32 %v742, 1.0
        %v888 = vadd.f32 %v744, 1.0
        %v889 = vadd.f32 %v746, 1.0
        %v890 = vadd.f32 %v748, 1.0
        %v891 = vadd.f32 %v750, 1.0
        %v892 = vadd.f32 %v752, 1.0
        %v893 = vadd.f32 %v754, 1.0
        %v894 = vadd.f32 %v756, 1.0
        %v895 = vadd.f32 %v758, 1.0
        %v896 = vadd.f32 %v760, 1.0
        %v897 = vadd.f32 %v762, 1.0
        %v898 = vadd.f32 %v764, 1.0
        %v899 = vadd.f32 %v766, 1.0
        %v900 = vadd.f32 %v768, 1.0
        %v901 = vadd.f32 %v770, 1.0
        %v902 = vadd.f32 %v772, 1.0
        %v903 = vadd.f32 %v774, 1.0
        %v904 = vadd.f32 %v776, 1.0
        %v905 = vrcp.pop %v777
        %v906 = vmul.f32 1.0, %v905
        %v907 = vrcp.pop %v778
        %v908 = vmul.f32 1.0, %v907
        %v909 = vrcp.pop %v779
        %v910 = vmul.f32 1.0, %v909
        %v911 = vrcp.pop %v780
        %v912 = vmul.f32 1.0, %v911
        %v913 = vrcp.pop %v781
        %v914 = vmul.f32 1.0, %v913
        %v915 = vrcp.pop %v782
        %v916 = vmul.f32 1.0, %v915
        %v917 = vrcp.pop %v783
        %v918 = vmul.f32 1.0, %v917
        %v919 = vrcp.pop %v784
        %v920 = vmul.f32 1.0, %v919
        %v921 = vrcp.pop %v785
        %v922 = vmul.f32 1.0, %v921
        %v923 = vrcp.pop %v786
        %v924 = vmul.f32 1.0, %v923
        %v925 = vrcp.pop %v787
        %v926 = vmul.f32 1.0, %v925
        %v927 = vrcp.pop %v788
        %v928 = vmul.f32 1.0, %v927
        %v929 = vrcp.pop %v789
        %v930 = vmul.f32 1.0, %v929
        %v931 = vrcp.pop %v790
        %v932 = vmul.f32 1.0, %v931
        %v933 = vrcp.pop %v791
        %v934 = vmul.f32 1.0, %v933
        %v935 = vrcp.pop %v792
        %v936 = vmul.f32 1.0, %v935
        %v937 = vrcp.pop %v793
        %v938 = vmul.f32 1.0, %v937
        %v939 = vrcp.pop %v794
        %v940 = vmul.f32 1.0, %v939
        %v941 = vrcp.pop %v795
        %v942 = vmul.f32 1.0, %v941
        %v943 = vrcp.pop %v796
        %v944 = vmul.f32 1.0, %v943
        %v945 = vrcp.pop %v797
        %v946 = vmul.f32 1.0, %v945
        %v947 = vrcp.pop %v798
        %v948 = vmul.f32 1.0, %v947
        %v949 = vrcp.pop %v799
        %v950 = vmul.f32 1.0, %v949
        %v951 = vrcp.pop %v800
        %v952 = vmul.f32 1.0, %v951
        %v953 = vrcp.pop %v801
        %v954 = vmul.f32 1.0, %v953
        %v955 = vrcp.pop %v802
        %v956 = vmul.f32 1.0, %v955
        %v957 = vrcp.pop %v803
        %v958 = vmul.f32 1.0, %v957
        %v959 = vrcp.pop %v804
        %v960 = vmul.f32 1.0, %v959
        %v961 = vrcp.pop %v805
        %v962 = vmul.f32 1.0, %v961
        %v963 = vrcp.pop %v806
        %v964 = vmul.f32 1.0, %v963
        %v965 = vrcp.pop %v807
        %v966 = vmul.f32 1.0, %v965
        %v967 = vrcp.pop %v808
        %v968 = vmul.f32 1.0, %v967
        %v969 = vrcp.pop %v809
        %v970 = vmul.f32 1.0, %v969
        %v971 = vrcp.pop %v810
        %v972 = vmul.f32 1.0, %v971
        %v973 = vrcp.pop %v811
        %v974 = vmul.f32 1.0, %v973
        %v975 = vrcp.pop %v812
        %v976 = vmul.f32 1.0, %v975
        %v977 = vrcp.pop %v813
        %v978 = vmul.f32 1.0, %v977
        %v979 = vrcp.pop %v814
        %v980 = vmul.f32 1.0, %v979
        %v981 = vrcp.pop %v815
        %v982 = vmul.f32 1.0, %v981
        %v983 = vrcp.pop %v816
        %v984 = vmul.f32 1.0, %v983
        %v985 = vrcp.pop %v817
        %v986 = vmul.f32 1.0, %v985
        %v987 = vrcp.pop %v818
        %v988 = vmul.f32 1.0, %v987
        %v989 = vrcp.pop %v819
        %v990 = vmul.f32 1.0, %v989
        %v991 = vrcp.pop %v820
        %v992 = vmul.f32 1.0, %v991
        %v993 = vrcp.pop %v821
        %v994 = vmul.f32 1.0, %v993
        %v995 = vrcp.pop %v822
        %v996 = vmul.f32 1.0, %v995
        %v997 = vrcp.pop %v823
        %v998 = vmul.f32 1.0, %v997
        %v999 = vrcp.pop %v824
        %v1000 = vmul.f32 1.0, %v999
        %v1001 = vrcp.pop %v825
        %v1002 = vmul.f32 1.0, %v1001
        %v1003 = vrcp.pop %v826
        %v1004 = vmul.f32 1.0, %v1003
        %v1005 = vrcp.pop %v827
        %v1006 = vmul.f32 1.0, %v1005
        %v1007 = vrcp.pop %v828
        %v1008 = vmul.f32 1.0, %v1007
        %v1009 = vrcp.pop %v829
        %v1010 = vmul.f32 1.0, %v1009
        %v1011 = vrcp.pop %v830
        %v1012 = vmul.f32 1.0, %v1011
        %v1013 = vrcp.pop %v831
        %v1014 = vmul.f32 1.0, %v1013
        %v1015 = vrcp.pop %v832
        %v1016 = vmul.f32 1.0, %v1015
        %v1017 = vrcp.pop %v833
        %v1018 = vmul.f32 1.0, %v1017
        %v1019 = vrcp.pop %v834
        %v1020 = vmul.f32 1.0, %v1019
        %v1021 = vrcp.pop %v835
        %v1022 = vmul.f32 1.0, %v1021
        %v1023 = vrcp.pop %v836
        %v1024 = vmul.f32 1.0, %v1023
        %v1025 = vrcp.pop %v837
        %v1026 = vmul.f32 1.0, %v1025
        %v1027 = vrcp.pop %v838
        %v1028 = vmul.f32 1.0, %v1027
        %v1029 = vrcp.pop %v839
        %v1030 = vmul.f32 1.0, %v1029
        %v1031 = vrcp.pop %v840
        %v1032 = vmul.f32 1.0, %v1031
        %v1033 = vrcp.pop %v841
        %v1034 = vmul.f32 1.0, %v1033
        %v1035 = vrcp.pop %v842
        %v1036 = vmul.f32 1.0, %v1035
        %v1037 = vrcp.pop %v843
        %v1038 = vmul.f32 1.0, %v1037
        %v1039 = vrcp.pop %v844
        %v1040 = vmul.f32 1.0, %v1039
        %v1041 = vrcp.pop %v845
        %v1042 = vmul.f32 1.0, %v1041
        %v1043 = vrcp.pop %v846
        %v1044 = vmul.f32 1.0, %v1043
        %v1045 = vrcp.pop %v847
        %v1046 = vmul.f32 1.0, %v1045
        %v1047 = vrcp.pop %v848
        %v1048 = vmul.f32 1.0, %v1047
        %v1049 = vrcp.pop %v849
        %v1050 = vmul.f32 1.0, %v1049
        %v1051 = vrcp.pop %v850
        %v1052 = vmul.f32 1.0, %v1051
        %v1053 = vrcp.pop %v851
        %v1054 = vmul.f32 1.0, %v1053
        %v1055 = vrcp.pop %v852
        %v1056 = vmul.f32 1.0, %v1055
        %v1057 = vrcp.pop %v853
        %v1058 = vmul.f32 1.0, %v1057
        %v1059 = vrcp.pop %v854
        %v1060 = vmul.f32 1.0, %v1059
        %v1061 = vrcp.pop %v855
        %v1062 = vmul.f32 1.0, %v1061
        %v1063 = vrcp.pop %v856
        %v1064 = vmul.f32 1.0, %v1063
        %v1065 = vrcp.pop %v857
        %v1066 = vmul.f32 1.0, %v1065
        %v1067 = vrcp.pop %v858
        %v1068 = vmul.f32 1.0, %v1067
        %v1069 = vrcp.pop %v859
        %v1070 = vmul.f32 1.0, %v1069
        %v1071 = vrcp.pop %v860
        %v1072 = vmul.f32 1.0, %v1071
        %v1073 = vrcp.pop %v861
        %v1074 = vmul.f32 1.0, %v1073
        %v1075 = vrcp.pop %v862
        %v1076 = vmul.f32 1.0, %v1075
        %v1077 = vrcp.pop %v863
        %v1078 = vmul.f32 1.0, %v1077
        %v1079 = vrcp.pop %v864
        %v1080 = vmul.f32 1.0, %v1079
        %v1081 = vrcp.pop %v865
        %v1082 = vmul.f32 1.0, %v1081
        %v1083 = vrcp.pop %v866
        %v1084 = vmul.f32 1.0, %v1083
        %v1085 = vrcp.pop %v867
        %v1086 = vmul.f32 1.0, %v1085
        %v1087 = vrcp.pop %v868
        %v1088 = vmul.f32 1.0, %v1087
        %v1089 = vrcp.pop %v869
        %v1090 = vmul.f32 1.0, %v1089
        %v1091 = vrcp.pop %v870
        %v1092 = vmul.f32 1.0, %v1091
        %v1093 = vrcp.pop %v871
        %v1094 = vmul.f32 1.0, %v1093
        %v1095 = vrcp.pop %v872
        %v1096 = vmul.f32 1.0, %v1095
        %v1097 = vrcp.pop %v873
        %v1098 = vmul.f32 1.0, %v1097
        %v1099 = vrcp.pop %v874
        %v1100 = vmul.f32 1.0, %v1099
        %v1101 = vrcp.pop %v875
        %v1102 = vmul.f32 1.0, %v1101
        %v1103 = vrcp.pop %v876
        %v1104 = vmul.f32 1.0, %v1103
        %v1105 = vrcp.pop %v877
        %v1106 = vmul.f32 1.0, %v1105
        %v1107 = vrcp.pop %v878
        %v1108 = vmul.f32 1.0, %v1107
        %v1109 = vrcp.pop %v879
        %v1110 = vmul.f32 1.0, %v1109
        %v1111 = vrcp.pop %v880
        %v1112 = vmul.f32 1.0, %v1111
        %v1113 = vrcp.pop %v881
        %v1114 = vmul.f32 1.0, %v1113
        %v1115 = vrcp.pop %v882
        %v1116 = vmul.f32 1.0, %v1115
        %v1117 = vrcp.pop %v883
        %v1118 = vmul.f32 1.0, %v1117
        %v1119 = vrcp.pop %v884
        %v1120 = vmul.f32 1.0, %v1119
        %v1121 = vrcp.pop %v885
        %v1122 = vmul.f32 1.0, %v1121
        %v1123 = vrcp.pop %v886
        %v1124 = vmul.f32 1.0, %v1123
        %v1125 = vrcp.pop %v887
        %v1126 = vmul.f32 1.0, %v1125
        %v1127 = vrcp.pop %v888
        %v1128 = vmul.f32 1.0, %v1127
        %v1129 = vrcp.pop %v889
        %v1130 = vmul.f32 1.0, %v1129
        %v1131 = vrcp.pop %v890
        %v1132 = vmul.f32 1.0, %v1131
        %v1133 = vrcp.pop %v891
        %v1134 = vmul.f32 1.0, %v1133
        %v1135 = vrcp.pop %v892
        %v1136 = vmul.f32 1.0, %v1135
        %v1137 = vrcp.pop %v893
        %v1138 = vmul.f32 1.0, %v1137
        %v1139 = vrcp.pop %v894
        %v1140 = vmul.f32 1.0, %v1139
        %v1141 = vrcp.pop %v895
        %v1142 = vmul.f32 1.0, %v1141
        %v1143 = vrcp.pop %v896
        %v1144 = vmul.f32 1.0, %v1143
        %v1145 = vrcp.pop %v897
        %v1146 = vmul.f32 1.0, %v1145
        %v1147 = vrcp.pop %v898
        %v1148 = vmul.f32 1.0, %v1147
        %v1149 = vrcp.pop %v899
        %v1150 = vmul.f32 1.0, %v1149
        %v1151 = vrcp.pop %v900
        %v1152 = vmul.f32 1.0, %v1151
        %v1153 = vrcp.pop %v901
        %v1154 = vmul.f32 1.0, %v1153
        %v1155 = vrcp.pop %v902
        %v1156 = vmul.f32 1.0, %v1155
        %v1157 = vrcp.pop %v903
        %v1158 = vmul.f32 1.0, %v1157
        %v1159 = vrcp.pop %v904
        %v1160 = vmul.f32 1.0, %v1159
        %1161 = vst [vmem:[%s134] sm:$0xff] %v906
        %1162 = vst [vmem:[%s134 + $0x8] sm:$0xff] %v908
        %1163 = vst [vmem:[%s134 + $0x10] sm:$0xff] %v910
        %1164 = vst [vmem:[%s134 + $0x18] sm:$0xff] %v912
        %1165 = vst [vmem:[%s134 + $0x20] sm:$0xff] %v914
        %1166 = vst [vmem:[%s134 + $0x28] sm:$0xff] %v916
        %1167 = vst [vmem:[%s134 + $0x30] sm:$0xff] %v918
        %1168 = vst [vmem:[%s134 + $0x38] sm:$0xff] %v920
        %1169 = vst [vmem:[%s134 + $0x40] sm:$0xff] %v922
        %1170 = vst [vmem:[%s134 + $0x48] sm:$0xff] %v924
        %1171 = vst [vmem:[%s134 + $0x50] sm:$0xff] %v926
        %1172 = vst [vmem:[%s134 + $0x58] sm:$0xff] %v928
        %1173 = vst [vmem:[%s134 + $0x60] sm:$0xff] %v930
        %1174 = vst [vmem:[%s134 + $0x68] sm:$0xff] %v932
        %1175 = vst [vmem:[%s134 + $0x70] sm:$0xff] %v934
        %1176 = vst [vmem:[%s134 + $0x78] sm:$0xff] %v936
        %1177 = vst [vmem:[%s134 + $0x80] sm:$0xff] %v938
        %1178 = vst [vmem:[%s134 + $0x88] sm:$0xff] %v940
        %1179 = vst [vmem:[%s134 + $0x90] sm:$0xff] %v942
        %1180 = vst [vmem:[%s134 + $0x98] sm:$0xff] %v944
        %1181 = vst [vmem:[%s134 + $0xa0] sm:$0xff] %v946
        %1182 = vst [vmem:[%s134 + $0xa8] sm:$0xff] %v948
        %1183 = vst [vmem:[%s134 + $0xb0] sm:$0xff] %v950
        %1184 = vst [vmem:[%s134 + $0xb8] sm:$0xff] %v952
        %1185 = vst [vmem:[%s134 + $0xc0] sm:$0xff] %v954
        %1186 = vst [vmem:[%s134 + $0xc8] sm:$0xff] %v956
        %1187 = vst [vmem:[%s134 + $0xd0] sm:$0xff] %v958
        %1188 = vst [vmem:[%s134 + $0xd8] sm:$0xff] %v960
        %1189 = vst [vmem:[%s134 + $0xe0] sm:$0xff] %v962
        %1190 = vst [vmem:[%s134 + $0xe8] sm:$0xff] %v964
        %1191 = vst [vmem:[%s134 + $0xf0] sm:$0xff] %v966
        %1192 = vst [vmem:[%s134 + $0xf8] sm:$0xff] %v968
        %1193 = vst [vmem:[%s134 + $0x100] sm:$0xff] %v970
        %1194 = vst [vmem:[%s134 + $0x108] sm:$0xff] %v972
        %1195 = vst [vmem:[%s134 + $0x110] sm:$0xff] %v974
        %1196 = vst [vmem:[%s134 + $0x118] sm:$0xff] %v976
        %1197 = vst [vmem:[%s134 + $0x120] sm:$0xff] %v978
        %1198 = vst [vmem:[%s134 + $0x128] sm:$0xff] %v980
        %1199 = vst [vmem:[%s134 + $0x130] sm:$0xff] %v982
        %1200 = vst [vmem:[%s134 + $0x138] sm:$0xff] %v984
        %1201 = vst [vmem:[%s134 + $0x140] sm:$0xff] %v986
        %1202 = vst [vmem:[%s134 + $0x148] sm:$0xff] %v988
        %1203 = vst [vmem:[%s134 + $0x150] sm:$0xff] %v990
        %1204 = vst [vmem:[%s134 + $0x158] sm:$0xff] %v992
        %1205 = vst [vmem:[%s134 + $0x160] sm:$0xff] %v994
        %1206 = vst [vmem:[%s134 + $0x168] sm:$0xff] %v996
        %1207 = vst [vmem:[%s134 + $0x170] sm:$0xff] %v998
        %1208 = vst [vmem:[%s134 + $0x178] sm:$0xff] %v1000
        %1209 = vst [vmem:[%s134 + $0x180] sm:$0xff] %v1002
        %1210 = vst [vmem:[%s134 + $0x188] sm:$0xff] %v1004
        %1211 = vst [vmem:[%s134 + $0x190] sm:$0xff] %v1006
        %1212 = vst [vmem:[%s134 + $0x198] sm:$0xff] %v1008
        %1213 = vst [vmem:[%s134 + $0x1a0] sm:$0xff] %v1010
        %1214 = vst [vmem:[%s134 + $0x1a8] sm:$0xff] %v1012
        %1215 = vst [vmem:[%s134 + $0x1b0] sm:$0xff] %v1014
        %1216 = vst [vmem:[%s134 + $0x1b8] sm:$0xff] %v1016
        %1217 = vst [vmem:[%s134 + $0x1c0] sm:$0xff] %v1018
        %1218 = vst [vmem:[%s134 + $0x1c8] sm:$0xff] %v1020
        %1219 = vst [vmem:[%s134 + $0x1d0] sm:$0xff] %v1022
        %1220 = vst [vmem:[%s134 + $0x1d8] sm:$0xff] %v1024
        %1221 = vst [vmem:[%s134 + $0x1e0] sm:$0xff] %v1026
        %1222 = vst [vmem:[%s134 + $0x1e8] sm:$0xff] %v1028
        %1223 = vst [vmem:[%s134 + $0x1f0] sm:$0xff] %v1030
        %1224 = vst [vmem:[%s134 + $0x1f8] sm:$0xff] %v1032
        %1225 = vst [vmem:[%s134 + $0x200] sm:$0xff] %v1034
        %1226 = vst [vmem:[%s134 + $0x208] sm:$0xff] %v1036
        %1227 = vst [vmem:[%s134 + $0x210] sm:$0xff] %v1038
        %1228 = vst [vmem:[%s134 + $0x218] sm:$0xff] %v1040
        %1229 = vst [vmem:[%s134 + $0x220] sm:$0xff] %v1042
        %1230 = vst [vmem:[%s134 + $0x228] sm:$0xff] %v1044
        %1231 = vst [vmem:[%s134 + $0x230] sm:$0xff] %v1046
        %1232 = vst [vmem:[%s134 + $0x238] sm:$0xff] %v1048
        %1233 = vst [vmem:[%s134 + $0x240] sm:$0xff] %v1050
        %1234 = vst [vmem:[%s134 + $0x248] sm:$0xff] %v1052
        %1235 = vst [vmem:[%s134 + $0x250] sm:$0xff] %v1054
        %1236 = vst [vmem:[%s134 + $0x258] sm:$0xff] %v1056
        %1237 = vst [vmem:[%s134 + $0x260] sm:$0xff] %v1058
        %1238 = vst [vmem:[%s134 + $0x268] sm:$0xff] %v1060
        %1239 = vst [vmem:[%s134 + $0x270] sm:$0xff] %v1062
        %1240 = vst [vmem:[%s134 + $0x278] sm:$0xff] %v1064
        %1241 = vst [vmem:[%s134 + $0x280] sm:$0xff] %v1066
        %1242 = vst [vmem:[%s134 + $0x288] sm:$0xff] %v1068
        %1243 = vst [vmem:[%s134 + $0x290] sm:$0xff] %v1070
        %1244 = vst [vmem:[%s134 + $0x298] sm:$0xff] %v1072
        %1245 = vst [vmem:[%s134 + $0x2a0] sm:$0xff] %v1074
        %1246 = vst [vmem:[%s134 + $0x2a8] sm:$0xff] %v1076
        %1247 = vst [vmem:[%s134 + $0x2b0] sm:$0xff] %v1078
        %1248 = vst [vmem:[%s134 + $0x2b8] sm:$0xff] %v1080
        %1249 = vst [vmem:[%s134 + $0x2c0] sm:$0xff] %v1082
        %1250 = vst [vmem:[%s134 + $0x2c8] sm:$0xff] %v1084
        %1251 = vst [vmem:[%s134 + $0x2d0] sm:$0xff] %v1086
        %1252 = vst [vmem:[%s134 + $0x2d8] sm:$0xff] %v1088
        %1253 = vst [vmem:[%s134 + $0x2e0] sm:$0xff] %v1090
        %1254 = vst [vmem:[%s134 + $0x2e8] sm:$0xff] %v1092
        %1255 = vst [vmem:[%s134 + $0x2f0] sm:$0xff] %v1094
        %1256 = vst [vmem:[%s134 + $0x2f8] sm:$0xff] %v1096
        %1257 = vst [vmem:[%s134 + $0x300] sm:$0xff] %v1098
        %1258 = vst [vmem:[%s134 + $0x308] sm:$0xff] %v1100
        %1259 = vst [vmem:[%s134 + $0x310] sm:$0xff] %v1102
        %1260 = vst [vmem:[%s134 + $0x318] sm:$0xff] %v1104
        %1261 = vst [vmem:[%s134 + $0x320] sm:$0xff] %v1106
        %1262 = vst [vmem:[%s134 + $0x328] sm:$0xff] %v1108
        %1263 = vst [vmem:[%s134 + $0x330] sm:$0xff] %v1110
        %1264 = vst [vmem:[%s134 + $0x338] sm:$0xff] %v1112
        %1265 = vst [vmem:[%s134 + $0x340] sm:$0xff] %v1114
        %1266 = vst [vmem:[%s134 + $0x348] sm:$0xff] %v1116
        %1267 = vst [vmem:[%s134 + $0x350] sm:$0xff] %v1118
        %1268 = vst [vmem:[%s134 + $0x358] sm:$0xff] %v1120
        %1269 = vst [vmem:[%s134 + $0x360] sm:$0xff] %v1122
        %1270 = vst [vmem:[%s134 + $0x368] sm:$0xff] %v1124
        %1271 = vst [vmem:[%s134 + $0x370] sm:$0xff] %v1126
        %1272 = vst [vmem:[%s134 + $0x378] sm:$0xff] %v1128
        %1273 = vst [vmem:[%s134 + $0x380] sm:$0xff] %v1130
        %1274 = vst [vmem:[%s134 + $0x388] sm:$0xff] %v1132
        %1275 = vst [vmem:[%s134 + $0x390] sm:$0xff] %v1134
        %1276 = vst [vmem:[%s134 + $0x398] sm:$0xff] %v1136
        %1277 = vst [vmem:[%s134 + $0x3a0] sm:$0xff] %v1138
        %1278 = vst [vmem:[%s134 + $0x3a8] sm:$0xff] %v1140
        %1279 = vst [vmem:[%s134 + $0x3b0] sm:$0xff] %v1142
        %1280 = vst [vmem:[%s134 + $0x3b8] sm:$0xff] %v1144
        %1281 = vst [vmem:[%s134 + $0x3c0] sm:$0xff] %v1146
        %1282 = vst [vmem:[%s134 + $0x3c8] sm:$0xff] %v1148
        %1283 = vst [vmem:[%s134 + $0x3d0] sm:$0xff] %v1150
        %1284 = vst [vmem:[%s134 + $0x3d8] sm:$0xff] %v1152
        %1285 = vst [vmem:[%s134 + $0x3e0] sm:$0xff] %v1154
        %1286 = vst [vmem:[%s134 + $0x3e8] sm:$0xff] %v1156
        %1287 = vst [vmem:[%s134 + $0x3f0] sm:$0xff] %v1158
        %1288 = vst [vmem:[%s134 + $0x3f8] sm:$0xff] %v1160
        %s1289 = sand.u32 %s52, 1
        %s1290 = scalar_lea.sflag [#allocation4], %s1289
        %s1291 = sand.u32 %s52, 1
        %s1292 = smul.addr %s1291, 1024
        %s1293 = scalar_lea.vmem [#allocation5], %s1292
        // Predicated region
        $region29: #{tpu_custom_call.1} parent=23 // pred_check
          %p1294 = pneg %p62
        $region30: #{tpu_custom_call.1} parent=23 // pred_check_branch
          %1296 = sbr.rel (%p1294) target = $region32
        $region31: #{tpu_custom_call.1} parent=23 // pred_region
          %s1297 = smul.u32 128, %s18
          %s1299 = ssub.s32 16384, 16384
          %1300 = vsyncadd %s1290, %s1299
          %s1301 = smul.addr %s1297, 128
          %s1302 = scalar_lea.hbm %s1, %s1301
          %s1303 = sshll.u32 %s1293, 4
          %s1304 = int_to_ptr.vmem [resolvable:$true] %s1303
          %1309 = dma.vmem_to_hbm [thread:$0]  %s1304, 16384, %s1302, %s1290, 128, 128, 8
        $region32: #{tpu_custom_call.1} parent=23 // pred_fallthru
          _
      $region24: #{tpu_custom_call.1} parent=5 // pred_fallthru
        _
      %p1310 = scmp.le.s32.totalorder 2, %s13
      // Predicated region
      $region33: #{tpu_custom_call.1} parent=5 // pred_check
        %p1311 = pneg %p1310
      $region34: #{tpu_custom_call.1} parent=5 // pred_check_branch
        %1313 = sbr.rel (%p1311) target = $region36
      $region35: #{tpu_custom_call.1} parent=5 // pred_region
        %s1314 = ssub.s32 %s13, 2
        // Predicated region
        $region37: #{tpu_custom_call.1} parent=35 // pred_check
          %p1315 = pneg %p68
        $region38: #{tpu_custom_call.1} parent=35 // pred_check_branch
          %1317 = sbr.rel (%p1315) target = $region40
        $region39: #{tpu_custom_call.1} parent=35 // pred_region
          %s1318 = sand.u32 %s53, 1
          %s1319 = scalar_lea.sflag [#allocation4], %s1318
          %s1320 = sand.u32 %s53, 1
          %s1321 = smul.addr %s1320, 1024
          %s1322 = scalar_lea.vmem [#allocation5], %s1321
          %1323 = dma.done %s1319, 16384
        $region40: #{tpu_custom_call.1} parent=35 // pred_fallthru
          _
      $region36: #{tpu_custom_call.1} parent=5 // pred_fallthru
        _
    $region6: #{tpu_custom_call.1} parent=1 // loop_footer
      %s17 = sadd.s32 1, %s13
    $region7: #{tpu_custom_call.1} parent=1 // loop_footer_branch
      %12 = sbr.rel target = $region3
    $region8: #{tpu_custom_call.1} parent=1 // loop_exit
      _
    %1324 = vsyncpa [#allocation3], 1
    %s1325 = scalar_lea.sflag [#allocation3], 1
    %1326 = vsyncpa %s1325, 1
    %1327 = vsyncpa [#allocation4], 1
    %s1328 = scalar_lea.sflag [#allocation4], 1
    %1329 = vsyncpa %s1328, 1

</llo_original>
